<compile_context>
chip_gen: v7x
topology: tpu7x:2x2x1
jax: 0.10.0
libtpu: 0.0.40
codegen_flags: <defaults>
</compile_context>

<pallas_src>
import functools

import jax
import jax.numpy as jnp
from jax.experimental import pallas as pl
from jax.experimental.pallas import tpu as pltpu


# ---------------------------------------------------------------------------
# Pallas kernel: all batches in one step; scaled-dot attention + tanh gating.
# ---------------------------------------------------------------------------
def _weighted_attention_kernel(q_ref, k_ref, v_ref, w_ref,
                               out_ref, attn_ref, *, temperature):
    q = q_ref[...]        # (B, S, H)
    k = k_ref[...]        # (B, S, H)
    v = v_ref[...]        # (B, S, H)
    w = w_ref[...]        # (S, S) learnt weight matrix (grid-invariant)

    inv_temp = 1.0 / float(temperature)   # trace-time constant

    # scores = (q @ k^T) / temperature   -- batched contraction on the MXU,
    # no explicit transpose; constant multiply instead of divide.
    scores = jnp.einsum("bqd,bkd->bqk", q, k,
                        preferred_element_type=jnp.float32) * inv_temp

    # softmax over last dim (torch dim=2), max-stabilized.
    scores = scores - jnp.max(scores, axis=-1, keepdims=True)
    expd = jnp.exp(scores)
    # exact reciprocal keeps the 1e-5 tolerance; approx=True would loosen it.
    probs = expd * pl.reciprocal(jnp.sum(expd, axis=-1, keepdims=True),
                                 approx=False)

    # attn = tanh(weights) * attn  -- tanh runs once per call (single grid step),
    # broadcast over the batch dim.
    attn = jnp.tanh(w) * probs

    # dropout == identity (eval mode)

    # output = attn @ v   (batched MXU matmul, f32 accumulation)
    out = jnp.einsum("bqk,bkd->bqd", attn, v,
                     preferred_element_type=jnp.float32)

    attn_ref[...] = attn.astype(attn_ref.dtype)
    out_ref[...] = out.astype(out_ref.dtype)


def weighted_attention(q, k, v, weights, temperature):
    """q,k,v: (B,S,H) f32; weights: (S,S) f32. Returns (output (B,S,H), attn (B,S,S))."""
    B, S, H = q.shape
    kernel = functools.partial(_weighted_attention_kernel, temperature=temperature)
    out, attn = pl.pallas_call(
        kernel,
        out_shape=(
            jax.ShapeDtypeStruct((B, S, H), q.dtype),
            jax.ShapeDtypeStruct((B, S, S), jnp.float32),
        ),
        grid_spec=pltpu.PrefetchScalarGridSpec(
            num_scalar_prefetch=0,
            grid=(1,),  # single step: everything (a few KB) fits VMEM trivially
            in_specs=[
                pl.BlockSpec((B, S, H), lambda i: (0, 0, 0)),  # q
                pl.BlockSpec((B, S, H), lambda i: (0, 0, 0)),  # k
                pl.BlockSpec((B, S, H), lambda i: (0, 0, 0)),  # v
                pl.BlockSpec((S, S), lambda i: (0, 0)),        # learnt weight matrix
            ],
            out_specs=[
                pl.BlockSpec((B, S, H), lambda i: (0, 0, 0)),
                pl.BlockSpec((B, S, S), lambda i: (0, 0, 0)),
            ],
        ),
        compiler_params=pltpu.CompilerParams(
            dimension_semantics=("arbitrary",)),
    )(q, k, v, weights)
    return out, attn


# ---------------------------------------------------------------------------
# Glue: parameter init + get_attn_weight construction (plain JAX/NumPy).
# ---------------------------------------------------------------------------
def init_attn_weight(key):
    # torch.nn.init.xavier_uniform_ on a (6,1) tensor with gain = calc_gain('tanh') = 5/3
    gain = 5.0 / 3.0
    fan_in, fan_out = 1, 6
    bound = gain * (6.0 / (fan_in + fan_out)) ** 0.5
    return jax.random.uniform(key, (6, 1), jnp.float32, minval=-bound, maxval=bound)


def get_attn_weight(attn_weight, N, K, query=True):
    """Builds the (N*K+1, N*K+1) weight matrix exactly as the torch loop does."""
    w_same_sample = attn_weight[0, 0]
    w_same_class = attn_weight[1, 0]
    w_diff_class = attn_weight[2, 0]
    w_stoquery = attn_weight[3, 0]
    w_querytos = attn_weight[4, 0]
    w_query = attn_weight[5, 0]

    S = N * K + 1
    i = jnp.arange(S)[:, None]
    j = jnp.arange(S)[None, :]

    support_i = i < N * K
    support_j = j < N * K
    same_class = (i // K) == (j // K)
    same_sample = i == j

    # support rows
    w = jnp.where(support_j, w_diff_class, w_stoquery)
    w = jnp.where(support_j & same_class, w_same_class, w)
    w = jnp.where(support_j & same_sample, w_same_sample, w)
    w = jnp.where(support_i, w, 0.0)

    if query:
        last_row = jnp.where(jnp.arange(S) < N * K, w_querytos, w_query)
        w = w.at[-1, :].set(last_row)
        return w
    else:
        return w[:-1, :-1]


def reference_forward(q, k, v, weights, temperature):
    attn = jnp.einsum("bsh,bth->bst", q, k) / temperature
    attn = jax.nn.softmax(attn, axis=2)
    attn = jnp.tanh(weights)[None] * attn
    out = jnp.einsum("bst,bth->bsh", attn, v)
    return out, attn


if __name__ == "__main__":
    # Small shapes implied by the module: seq = N*K + 1 (support + query).
    N, K = 2, 4
    B, H = 2, 32
    S = N * K + 1  # 9
    temperature = float(H) ** 0.5

    key = jax.random.PRNGKey(0)
    kq, kk, kv, kw = jax.random.split(key, 4)
    q = jax.random.normal(kq, (B, S, H), jnp.float32)
    k = jax.random.normal(kk, (B, S, H), jnp.float32)
    v = jax.random.normal(kv, (B, S, H), jnp.float32)

    attn_weight_param = init_attn_weight(kw)          # (6, 1) learnt parameter
    weights = get_attn_weight(attn_weight_param, N, K, query=True)  # (S, S)

    out, attn = weighted_attention(q, k, v, weights, temperature)
    jax.block_until_ready((out, attn))

    out_ref, attn_ref = reference_forward(q, k, v, weights, temperature)
    assert jnp.allclose(out, out_ref, atol=1e-5, rtol=1e-5)
    assert jnp.allclose(attn, attn_ref, atol=1e-5, rtol=1e-5)

    print("KERNEL_OK")
</pallas_src>

<mosaic_0001>
module attributes {stable_mosaic.version = 11 : i64} {
  func.func @_weighted_attention_kernel(%arg0: i32, %arg1: memref<2x9x32xf32, #tpu.memory_space<vmem>>, %arg2: memref<2x9x32xf32, #tpu.memory_space<vmem>>, %arg3: memref<2x9x32xf32, #tpu.memory_space<vmem>>, %arg4: memref<9x9xf32, #tpu.memory_space<vmem>>, %arg5: memref<2x9x32xf32, #tpu.memory_space<vmem>>, %arg6: memref<2x9x9xf32, #tpu.memory_space<vmem>>) attributes {dimension_semantics = [#tpu.dimension_semantics<arbitrary>], iteration_bounds = array<i64: 1>, scalar_prefetch = 0 : i64, scratch_operands = 0 : i64, tpu.core_type = #tpu.core_type<tc>, window_params = [{pipeline_mode = #tpu.pipeline_mode<synchronous>, transform_indices = @transform_0, window_bounds = array<i64: 2, 9, 32>}, {pipeline_mode = #tpu.pipeline_mode<synchronous>, transform_indices = @transform_1, window_bounds = array<i64: 2, 9, 32>}, {pipeline_mode = #tpu.pipeline_mode<synchronous>, transform_indices = @transform_2, window_bounds = array<i64: 2, 9, 32>}, {pipeline_mode = #tpu.pipeline_mode<synchronous>, transform_indices = @transform_3, window_bounds = array<i64: 9, 9>}, {pipeline_mode = #tpu.pipeline_mode<synchronous>, transform_indices = @transform_4, window_bounds = array<i64: 2, 9, 32>}, {pipeline_mode = #tpu.pipeline_mode<synchronous>, transform_indices = @transform_5, window_bounds = array<i64: 2, 9, 9>}]} {
    %c0 = arith.constant 0 : index
    %c0_0 = arith.constant 0 : index
    %c0_1 = arith.constant 0 : index
    %0 = vector.load %arg1[%c0, %c0_0, %c0_1] : memref<2x9x32xf32, #tpu.memory_space<vmem>>, vector<2x9x32xf32>
    %c0_2 = arith.constant 0 : index
    %c0_3 = arith.constant 0 : index
    %c0_4 = arith.constant 0 : index
    %1 = vector.load %arg2[%c0_2, %c0_3, %c0_4] : memref<2x9x32xf32, #tpu.memory_space<vmem>>, vector<2x9x32xf32>
    %c0_5 = arith.constant 0 : index
    %c0_6 = arith.constant 0 : index
    %c0_7 = arith.constant 0 : index
    %2 = vector.load %arg3[%c0_5, %c0_6, %c0_7] : memref<2x9x32xf32, #tpu.memory_space<vmem>>, vector<2x9x32xf32>
    %c0_8 = arith.constant 0 : index
    %c0_9 = arith.constant 0 : index
    %3 = vector.load %arg4[%c0_8, %c0_9] : memref<9x9xf32, #tpu.memory_space<vmem>>, vector<9x9xf32>
    "tpu.trace_start"() <{level = 10 : i32, message = "bqd,bkd->bqk"}> : () -> ()
    %cst = arith.constant dense<0.000000e+00> : vector<2x9x9xf32>
    %4 = tpu.matmul %0, %1, %cst {dimension_numbers = #tpu.dot_dimension_numbers<[2], [2], [1], [1], [0, 0, 0, 1, 1, 1], [0], [0]>} : vector<2x9x32xf32>, vector<2x9x32xf32>, vector<2x9x9xf32> -> vector<2x9x9xf32>
    "tpu.trace_stop"() : () -> ()
    %cst_10 = arith.constant 0.176776692 : f32
    %5 = vector.broadcast %cst_10 : f32 to vector<2x9x9xf32>
    %6 = arith.mulf %4, %5 : vector<2x9x9xf32>
    %cst_11 = arith.constant dense<0xFF800000> : vector<2x9xf32>
    %7 = vector.multi_reduction <maximumf>, %6, %cst_11 [2] : vector<2x9x9xf32> to vector<2x9xf32>
    %8 = vector.shape_cast %7 : vector<2x9xf32> to vector<2x9x1xf32>
    %9 = vector.broadcast %8 : vector<2x9x1xf32> to vector<2x9x9xf32>
    %10 = arith.subf %6, %9 : vector<2x9x9xf32>
    %11 = math.exp %10 : vector<2x9x9xf32>
    %cst_12 = arith.constant dense<0.000000e+00> : vector<2x9xf32>
    %12 = vector.multi_reduction <add>, %11, %cst_12 [2] : vector<2x9x9xf32> to vector<2x9xf32>
    %13 = vector.shape_cast %12 : vector<2x9xf32> to vector<2x9x1xf32>
    %14 = tpu.reciprocal %13 : vector<2x9x1xf32> -> vector<2x9x1xf32>
    %15 = vector.broadcast %14 : vector<2x9x1xf32> to vector<2x9x9xf32>
    %16 = arith.mulf %11, %15 : vector<2x9x9xf32>
    %17 = math.tanh %3 : vector<9x9xf32>
    %18 = vector.shape_cast %17 : vector<9x9xf32> to vector<1x9x9xf32>
    %19 = vector.broadcast %18 : vector<1x9x9xf32> to vector<2x9x9xf32>
    %20 = arith.mulf %19, %16 : vector<2x9x9xf32>
    "tpu.trace_start"() <{level = 10 : i32, message = "bqk,bkd->bqd"}> : () -> ()
    %cst_13 = arith.constant dense<0.000000e+00> : vector<2x9x32xf32>
    %21 = tpu.matmul %20, %2, %cst_13 {dimension_numbers = #tpu.dot_dimension_numbers<[2], [1], [1], [2], [0, 0, 0, 1, 1, 2], [0], [0]>} : vector<2x9x9xf32>, vector<2x9x32xf32>, vector<2x9x32xf32> -> vector<2x9x32xf32>
    "tpu.trace_stop"() : () -> ()
    %c0_14 = arith.constant 0 : index
    %c0_15 = arith.constant 0 : index
    %c0_16 = arith.constant 0 : index
    %22 = vector.load %arg6[%c0_14, %c0_15, %c0_16] : memref<2x9x9xf32, #tpu.memory_space<vmem>>, vector<2x9x9xf32>
    tpu.vector_store %arg6[%c0_14, %c0_15, %c0_16], %20 {strides = array<i32>} : memref<2x9x9xf32, #tpu.memory_space<vmem>>, vector<2x9x9xf32>,
    %c0_17 = arith.constant 0 : index
    %c0_18 = arith.constant 0 : index
    %c0_19 = arith.constant 0 : index
    %23 = vector.load %arg5[%c0_17, %c0_18, %c0_19] : memref<2x9x32xf32, #tpu.memory_space<vmem>>, vector<2x9x32xf32>
    tpu.vector_store %arg5[%c0_17, %c0_18, %c0_19], %21 {strides = array<i32>} : memref<2x9x32xf32, #tpu.memory_space<vmem>>, vector<2x9x32xf32>,
    return
  }
  func.func @transform_0(%arg0: i32) -> (i32, i32, i32) {
    %c0_i32 = arith.constant 0 : i32
    %c0_i32_0 = arith.constant 0 : i32
    %c0_i32_1 = arith.constant 0 : i32
    %c0_i32_2 = arith.constant 0 : i32
    return %c0_i32, %c0_i32_0, %c0_i32_1 : i32, i32, i32
  }
  func.func @transform_1(%arg0: i32) -> (i32, i32, i32) {
    %c0_i32 = arith.constant 0 : i32
    %c0_i32_0 = arith.constant 0 : i32
    %c0_i32_1 = arith.constant 0 : i32
    %c0_i32_2 = arith.constant 0 : i32
    return %c0_i32, %c0_i32_0, %c0_i32_1 : i32, i32, i32
  }
  func.func @transform_2(%arg0: i32) -> (i32, i32, i32) {
    %c0_i32 = arith.constant 0 : i32
    %c0_i32_0 = arith.constant 0 : i32
    %c0_i32_1 = arith.constant 0 : i32
    %c0_i32_2 = arith.constant 0 : i32
    return %c0_i32, %c0_i32_0, %c0_i32_1 : i32, i32, i32
  }
  func.func @transform_3(%arg0: i32) -> (i32, i32) {
    %c0_i32 = arith.constant 0 : i32
    %c0_i32_0 = arith.constant 0 : i32
    %c0_i32_1 = arith.constant 0 : i32
    return %c0_i32, %c0_i32_0 : i32, i32
  }
  func.func @transform_4(%arg0: i32) -> (i32, i32, i32) {
    %c0_i32 = arith.constant 0 : i32
    %c0_i32_0 = arith.constant 0 : i32
    %c0_i32_1 = arith.constant 0 : i32
    %c0_i32_2 = arith.constant 0 : i32
    return %c0_i32, %c0_i32_0, %c0_i32_1 : i32, i32, i32
  }
  func.func @transform_5(%arg0: i32) -> (i32, i32, i32) {
    %c0_i32 = arith.constant 0 : i32
    %c0_i32_0 = arith.constant 0 : i32
    %c0_i32_1 = arith.constant 0 : i32
    %c0_i32_2 = arith.constant 0 : i32
    return %c0_i32, %c0_i32_0, %c0_i32_1 : i32, i32, i32
  }
}

</mosaic_0001>

<llo_original>
// kernel: tpu_custom_call.1
$region0: #{tpu_custom_call.1}
  #allocation0 [shape = 'u32[]', space=smem, size = 0x4, offset = 0x4, fixed_abs, tag = 'smem constant byte address 0x4 - core index']
  #allocation1 [shape = 'u32[144,128]{1,0:T(1,128)}', space=vmem, size = 0x12000, scoped, tag = 'internal scratch']
  %s0 = inlined_call_operand.vmem [shape: f32[2,9,32], index: 0, kind: input, shape index: {}]
  %s1 = inlined_call_operand.vmem [shape: f32[2,9,32], index: 1, kind: input, shape index: {}]
  %s2 = inlined_call_operand.vmem [shape: f32[2,9,32], index: 2, kind: input, shape index: {}]
  %s3 = inlined_call_operand.vmem [shape: f32[9,9], index: 3, kind: input, shape index: {}]
  %s4 = inlined_call_operand.vmem [shape: f32[2,9,32], index: 4, kind: output, shape index: {0}]
  %s5 = inlined_call_operand.vmem [shape: f32[2,9,9], index: 5, kind: output, shape index: {1}]
  %6 = xla_tuple %s4, %s5
  %s7 = sld [smem:[#allocation0]]
  $region34: #{tpu_custom_call.1} parent=0
    _
  %s9 = ssub.s32 1, %s7
  %s10 = scalar_select 0, %s9, %s7
  // Predicated region
  $region2: #{tpu_custom_call.1} parent=0 // pred_check
    _
  $region3: #{tpu_custom_call.1} parent=0 // pred_check_branch
    %12 = sbr.rel (0) target = $region5
  $region4: #{tpu_custom_call.1} parent=0 // pred_region
    _
  $region5: #{tpu_custom_call.1} parent=0 // pred_fallthru
    _
  // Predicated region
  $region6: #{tpu_custom_call.1} parent=0 // pred_check
    _
  $region7: #{tpu_custom_call.1} parent=0 // pred_check_branch
    %14 = sbr.rel (0) target = $region9
  $region8: #{tpu_custom_call.1} parent=0 // pred_region
    _
  $region9: #{tpu_custom_call.1} parent=0 // pred_fallthru
    _
  // Predicated region
  $region10: #{tpu_custom_call.1} parent=0 // pred_check
    _
  $region11: #{tpu_custom_call.1} parent=0 // pred_check_branch
    %16 = sbr.rel (0) target = $region13
  $region12: #{tpu_custom_call.1} parent=0 // pred_region
    _
  $region13: #{tpu_custom_call.1} parent=0 // pred_fallthru
    _
  // Predicated region
  $region14: #{tpu_custom_call.1} parent=0 // pred_check
    _
  $region15: #{tpu_custom_call.1} parent=0 // pred_check_branch
    %18 = sbr.rel (0) target = $region17
  $region16: #{tpu_custom_call.1} parent=0 // pred_region
    _
  $region17: #{tpu_custom_call.1} parent=0 // pred_fallthru
    _
  %v19 = vld [vmem:[%s0] sm:$0xff]
  %v20 = vld [vmem:[%s0 + $0x8] sm:$0x1]
  %v21 = vld [vmem:[%s0 + $0x10] sm:$0xff]
  %v22 = vld [vmem:[%s0 + $0x18] sm:$0x1]
  %v23 = vld [vmem:[%s1] sm:$0xff]
  %v24 = vld [vmem:[%s1 + $0x8] sm:$0x1]
  %v25 = vld [vmem:[%s1 + $0x10] sm:$0xff]
  %v26 = vld [vmem:[%s1 + $0x18] sm:$0x1]
  %v27 = vld [vmem:[%s2] sm:$0xff]
  %v28 = vld [vmem:[%s2 + $0x8] sm:$0x1]
  %v29 = vld [vmem:[%s2 + $0x10] sm:$0xff]
  %v30 = vld [vmem:[%s2 + $0x18] sm:$0x1]
  %v31 = vld [vmem:[%s3] sm:$0xff]
  %v32 = vld [vmem:[%s3 + $0x8] sm:$0x1]
  %vm33 = vcmask 261120
  %v35 = vsel %vm33, %v19, 0
  %v38 = vsel %vm33, %v20, 0
  %v41 = vsel %vm33, %v23, 0
  %v44 = vsel %vm33, %v24, 0
  %46 = vmatprep.subr.mxu0 0.0
  %47 = vmatpush1.xpose.msra.mxu0 %v41
  %48 = vmatprep.subr.mxu0 0.0
  %49 = vmatpush1.xpose.msra.mxu0 %v44
  %50 = vmatprep.subr.mxu0 0.0
  %51 = vmatpush1.xpose.msra.mxu0 0.0
  %52 = vmatprep.subr.mxu0 0.0
  %53 = vmatpush1.xpose.msra.mxu0 0.0
  %54 = vmatprep.subr.mxu0 0.0
  %55 = vmatpush1.xpose.msra.mxu0 0.0
  %56 = vmatprep.subr.mxu0 0.0
  %57 = vmatpush1.xpose.msra.mxu0 0.0
  %58 = vmatprep.subr.mxu0 0.0
  %59 = vmatpush1.xpose.msra.mxu0 0.0
  %60 = vmatprep.subr.mxu0 0.0
  %61 = vmatpush1.xpose.msra.mxu0 0.0
  %62 = vmatprep.subr.mxu0 0.0
  %63 = vmatpush1.xpose.msra.mxu0 0.0
  %64 = vmatprep.subr.mxu0 0.0
  %65 = vmatpush1.xpose.msra.mxu0 0.0
  %66 = vmatprep.subr.mxu0 0.0
  %67 = vmatpush1.xpose.msra.mxu0 0.0
  %68 = vmatprep.subr.mxu0 0.0
  %69 = vmatpush1.xpose.msra.mxu0 0.0
  %70 = vmatprep.subr.mxu0 0.0
  %71 = vmatpush1.xpose.msra.mxu0 0.0
  %72 = vmatprep.subr.mxu0 0.0
  %73 = vmatpush1.xpose.msra.mxu0 0.0
  %74 = vmatprep.subr.mxu0 0.0
  %75 = vmatpush1.xpose.msra.mxu0 0.0
  %76 = vmatprep.subr.mxu0 0.0
  %77 = vmatpush1.xpose.msra.mxu0 0.0
  %78 = vmatprep.subr.mxu0 0.0
  %79 = vmatpush1.xpose.msra.mxu0 0.0
  %80 = vmatprep.subr.mxu0 0.0
  %81 = vmatpush1.xpose.msra.mxu0 0.0
  %82 = vmatprep.subr.mxu0 0.0
  %83 = vmatpush1.xpose.msra.mxu0 0.0
  %84 = vmatprep.subr.mxu0 0.0
  %85 = vmatpush1.xpose.msra.mxu0 0.0
  %86 = vmatprep.subr.mxu0 0.0
  %87 = vmatpush1.xpose.msra.mxu0 0.0
  %88 = vmatprep.subr.mxu0 0.0
  %89 = vmatpush1.xpose.msra.mxu0 0.0
  %90 = vmatprep.subr.mxu0 0.0
  %91 = vmatpush1.xpose.msra.mxu0 0.0
  %92 = vmatprep.subr.mxu0 0.0
  %93 = vmatpush1.xpose.msra.mxu0 0.0
  %94 = vmatprep.subr.mxu0 0.0
  %95 = vmatpush1.xpose.msra.mxu0 0.0
  %96 = vmatprep.subr.mxu0 0.0
  %97 = vmatpush1.xpose.msra.mxu0 0.0
  %98 = vmatprep.subr.mxu0 0.0
  %99 = vmatpush1.xpose.msra.mxu0 0.0
  %100 = vmatprep.subr.mxu0 0.0
  %101 = vmatpush1.xpose.msra.mxu0 0.0
  %102 = vmatprep.subr.mxu0 0.0
  %103 = vmatpush1.xpose.msra.mxu0 0.0
  %104 = vmatprep.subr.mxu0 0.0
  %105 = vmatpush1.xpose.msra.mxu0 0.0
  %106 = vmatprep.subr.mxu0 0.0
  %107 = vmatpush1.xpose.msra.mxu0 0.0
  %108 = vmatprep.subr.mxu0 0.0
  %109 = vmatpush1.xpose.msra.mxu0 0.0
  %110 = vmatprep.mubr.f32.mxu0 0.0
  %111 = vmatmul.mubr.f32.gmra.mrb[0].mxu0 %v35
  %v112 = vpop.f32.mrb[0].mxu0
  %v113 = vadd.f32 0.0, %v112
  %v114 = vpop.f32.mrb[0].mxu0
  %115 = vmatprep.mubr.f32.mxu0 0.0
  %116 = vmatmul.mubr.f32.gmra.mrb[0].mxu0 %v38
  %v117 = vpop.f32.mrb[0].mxu0
  %v118 = vadd.f32 0.0, %v117
  %v119 = vpop.f32.mrb[0].mxu0
  %120 = vdwg.mxu0
  %v122 = vsel %vm33, %v21, 0
  %v125 = vsel %vm33, %v22, 0
  %v128 = vsel %vm33, %v25, 0
  %v131 = vsel %vm33, %v26, 0
  %133 = vmatprep.subr.mxu0 0.0
  %134 = vmatpush1.xpose.msra.mxu0 %v128
  %135 = vmatprep.subr.mxu0 0.0
  %136 = vmatpush1.xpose.msra.mxu0 %v131
  %137 = vmatprep.subr.mxu0 0.0
  %138 = vmatpush1.xpose.msra.mxu0 0.0
  %139 = vmatprep.subr.mxu0 0.0
  %140 = vmatpush1.xpose.msra.mxu0 0.0
  %141 = vmatprep.subr.mxu0 0.0
  %142 = vmatpush1.xpose.msra.mxu0 0.0
  %143 = vmatprep.subr.mxu0 0.0
  %144 = vmatpush1.xpose.msra.mxu0 0.0
  %145 = vmatprep.subr.mxu0 0.0
  %146 = vmatpush1.xpose.msra.mxu0 0.0
  %147 = vmatprep.subr.mxu0 0.0
  %148 = vmatpush1.xpose.msra.mxu0 0.0
  %149 = vmatprep.subr.mxu0 0.0
  %150 = vmatpush1.xpose.msra.mxu0 0.0
  %151 = vmatprep.subr.mxu0 0.0
  %152 = vmatpush1.xpose.msra.mxu0 0.0
  %153 = vmatprep.subr.mxu0 0.0
  %154 = vmatpush1.xpose.msra.mxu0 0.0
  %155 = vmatprep.subr.mxu0 0.0
  %156 = vmatpush1.xpose.msra.mxu0 0.0
  %157 = vmatprep.subr.mxu0 0.0
  %158 = vmatpush1.xpose.msra.mxu0 0.0
  %159 = vmatprep.subr.mxu0 0.0
  %160 = vmatpush1.xpose.msra.mxu0 0.0
  %161 = vmatprep.subr.mxu0 0.0
  %162 = vmatpush1.xpose.msra.mxu0 0.0
  %163 = vmatprep.subr.mxu0 0.0
  %164 = vmatpush1.xpose.msra.mxu0 0.0
  %165 = vmatprep.subr.mxu0 0.0
  %166 = vmatpush1.xpose.msra.mxu0 0.0
  %167 = vmatprep.subr.mxu0 0.0
  %168 = vmatpush1.xpose.msra.mxu0 0.0
  %169 = vmatprep.subr.mxu0 0.0
  %170 = vmatpush1.xpose.msra.mxu0 0.0
  %171 = vmatprep.subr.mxu0 0.0
  %172 = vmatpush1.xpose.msra.mxu0 0.0
  %173 = vmatprep.subr.mxu0 0.0
  %174 = vmatpush1.xpose.msra.mxu0 0.0
  %175 = vmatprep.subr.mxu0 0.0
  %176 = vmatpush1.xpose.msra.mxu0 0.0
  %177 = vmatprep.subr.mxu0 0.0
  %178 = vmatpush1.xpose.msra.mxu0 0.0
  %179 = vmatprep.subr.mxu0 0.0
  %180 = vmatpush1.xpose.msra.mxu0 0.0
  %181 = vmatprep.subr.mxu0 0.0
  %182 = vmatpush1.xpose.msra.mxu0 0.0
  %183 = vmatprep.subr.mxu0 0.0
  %184 = vmatpush1.xpose.msra.mxu0 0.0
  %185 = vmatprep.subr.mxu0 0.0
  %186 = vmatpush1.xpose.msra.mxu0 0.0
  %187 = vmatprep.subr.mxu0 0.0
  %188 = vmatpush1.xpose.msra.mxu0 0.0
  %189 = vmatprep.subr.mxu0 0.0
  %190 = vmatpush1.xpose.msra.mxu0 0.0
  %191 = vmatprep.subr.mxu0 0.0
  %192 = vmatpush1.xpose.msra.mxu0 0.0
  %193 = vmatprep.subr.mxu0 0.0
  %194 = vmatpush1.xpose.msra.mxu0 0.0
  %195 = vmatprep.subr.mxu0 0.0
  %196 = vmatpush1.xpose.msra.mxu0 0.0
  %197 = vmatprep.mubr.f32.mxu0 0.0
  %198 = vmatmul.mubr.f32.gmra.mrb[0].mxu0 %v122
  %v199 = vpop.f32.mrb[0].mxu0
  %v200 = vadd.f32 0.0, %v199
  %v201 = vpop.f32.mrb[0].mxu0
  %202 = vmatprep.mubr.f32.mxu0 0.0
  %203 = vmatmul.mubr.f32.gmra.mrb[0].mxu0 %v125
  %v204 = vpop.f32.mrb[0].mxu0
  %v205 = vadd.f32 0.0, %v204
  %v206 = vpop.f32.mrb[0].mxu0
  %207 = vdwg.mxu0
  %v208 = vmul.f32 %v113, 0.17677669
  %v209 = vmul.f32 %v118, 0.17677669
  %v210 = vmul.f32 %v200, 0.17677669
  %v211 = vmul.f32 %v205, 0.17677669
  %vm212 = vcmask 72704
  %v213 = vsel %vm212, %v208, -inf
  %214 = vmax.xlane.f32.xlu0 %v213
  %v215 = vpop.xlane.xlu0 %214
  %vm216 = vcmask 65536
  %v217 = vsel %vm216, %v209, -inf
  %218 = vmax.xlane.f32.xlu0 %v217
  %v219 = vpop.xlane.xlu0 %218
  %v220 = vsel %vm212, %v210, -inf
  %221 = vmax.xlane.f32.xlu0 %v220
  %v222 = vpop.xlane.xlu0 %221
  %v223 = vsel %vm216, %v211, -inf
  %224 = vmax.xlane.f32.xlu0 %v223
  %v225 = vpop.xlane.xlu0 %224
  %v226 = vsub.f32 %v208, %v215
  %v227 = vsub.f32 %v209, %v219
  %v228 = vsub.f32 %v210, %v222
  %v229 = vsub.f32 %v211, %v225
  %v230 = vmul.f32 %v226, 1.442695
  %v231 = vpow.pop %v230
  %v232 = vmul.f32 %v227, 1.442695
  %v233 = vpow.pop %v232
  %v234 = vmul.f32 %v228, 1.442695
  %v235 = vpow.pop %v234
  %v236 = vmul.f32 %v229, 1.442695
  %v237 = vpow.pop %v236
  %v238 = vsel %vm212, %v231, 0.0
  %239 = vadd.xlane.f32.xlu0 %v238
  %v240 = vpop.xlane.xlu0 %239
  %v241 = vsel %vm216, %v233, 0.0
  %242 = vadd.xlane.f32.xlu0 %v241
  %v243 = vpop.xlane.xlu0 %242
  %v244 = vsel %vm212, %v235, 0.0
  %245 = vadd.xlane.f32.xlu0 %v244
  %v246 = vpop.xlane.xlu0 %245
  %v247 = vsel %vm216, %v237, 0.0
  %248 = vadd.xlane.f32.xlu0 %v247
  %v249 = vpop.xlane.xlu0 %248
  %v250 = vrcp.pop %v240
  %v251 = vrcp.pop %v243
  %v252 = vrcp.pop %v246
  %v253 = vrcp.pop %v249
  %v254 = vmul.f32 %v231, %v250
  %v255 = vmul.f32 %v233, %v251
  %v256 = vmul.f32 %v235, %v252
  %v257 = vmul.f32 %v237, %v253
  %v258 = vtanh.pop %v31
  %v259 = vtanh.pop %v32
  %v260 = vmul.f32 %v258, %v254
  %v261 = vmul.f32 %v259, %v255
  %v262 = vmul.f32 %v258, %v256
  %v263 = vmul.f32 %v259, %v257
  %v265 = vsel %vm212, %v260, 0
  %v268 = vsel %vm212, %v261, 0
  %vm270 = vcmask 1040384
  %v272 = vsel %vm270, %v28, 0
  %274 = vmatprep.subr.mxu0 0.0
  %275 = vmatpush1.msra.mxu0 %v27
  %276 = vmatprep.subr.mxu0 0.0
  %277 = vmatpush1.msra.mxu0 %v272
  %278 = vmatprep.subr.mxu0 0.0
  %279 = vmatpush1.msra.mxu0 0.0
  %280 = vmatprep.subr.mxu0 0.0
  %281 = vmatpush1.msra.mxu0 0.0
  %282 = vmatprep.subr.mxu0 0.0
  %283 = vmatpush1.msra.mxu0 0.0
  %284 = vmatprep.subr.mxu0 0.0
  %285 = vmatpush1.msra.mxu0 0.0
  %286 = vmatprep.subr.mxu0 0.0
  %287 = vmatpush1.msra.mxu0 0.0
  %288 = vmatprep.subr.mxu0 0.0
  %289 = vmatpush1.msra.mxu0 0.0
  %290 = vmatprep.subr.mxu0 0.0
  %291 = vmatpush1.msra.mxu0 0.0
  %292 = vmatprep.subr.mxu0 0.0
  %293 = vmatpush1.msra.mxu0 0.0
  %294 = vmatprep.subr.mxu0 0.0
  %295 = vmatpush1.msra.mxu0 0.0
  %296 = vmatprep.subr.mxu0 0.0
  %297 = vmatpush1.msra.mxu0 0.0
  %298 = vmatprep.subr.mxu0 0.0
  %299 = vmatpush1.msra.mxu0 0.0
  %300 = vmatprep.subr.mxu0 0.0
  %301 = vmatpush1.msra.mxu0 0.0
  %302 = vmatprep.subr.mxu0 0.0
  %303 = vmatpush1.msra.mxu0 0.0
  %304 = vmatprep.subr.mxu0 0.0
  %305 = vmatpush1.msra.mxu0 0.0
  %306 = vmatprep.subr.mxu0 0.0
  %307 = vmatpush1.msra.mxu0 0.0
  %308 = vmatprep.subr.mxu0 0.0
  %309 = vmatpush1.msra.mxu0 0.0
  %310 = vmatprep.subr.mxu0 0.0
  %311 = vmatpush1.msra.mxu0 0.0
  %312 = vmatprep.subr.mxu0 0.0
  %313 = vmatpush1.msra.mxu0 0.0
  %314 = vmatprep.subr.mxu0 0.0
  %315 = vmatpush1.msra.mxu0 0.0
  %316 = vmatprep.subr.mxu0 0.0
  %317 = vmatpush1.msra.mxu0 0.0
  %318 = vmatprep.subr.mxu0 0.0
  %319 = vmatpush1.msra.mxu0 0.0
  %320 = vmatprep.subr.mxu0 0.0
  %321 = vmatpush1.msra.mxu0 0.0
  %322 = vmatprep.subr.mxu0 0.0
  %323 = vmatpush1.msra.mxu0 0.0
  %324 = vmatprep.subr.mxu0 0.0
  %325 = vmatpush1.msra.mxu0 0.0
  %326 = vmatprep.subr.mxu0 0.0
  %327 = vmatpush1.msra.mxu0 0.0
  %328 = vmatprep.subr.mxu0 0.0
  %329 = vmatpush1.msra.mxu0 0.0
  %330 = vmatprep.subr.mxu0 0.0
  %331 = vmatpush1.msra.mxu0 0.0
  %332 = vmatprep.subr.mxu0 0.0
  %333 = vmatpush1.msra.mxu0 0.0
  %334 = vmatprep.subr.mxu0 0.0
  %335 = vmatpush1.msra.mxu0 0.0
  %336 = vmatprep.subr.mxu0 0.0
  %337 = vmatpush1.msra.mxu0 0.0
  %338 = vmatprep.mubr.f32.mxu0 0.0
  %339 = vmatmul.mubr.f32.gmra.mrb[0].mxu0 %v265
  %v340 = vpop.f32.mrb[0].mxu0
  %v341 = vadd.f32 0.0, %v340
  %v342 = vpop.f32.mrb[0].mxu0
  %343 = vmatprep.mubr.f32.mxu0 0.0
  %344 = vmatmul.mubr.f32.gmra.mrb[0].mxu0 %v268
  %v345 = vpop.f32.mrb[0].mxu0
  %v346 = vadd.f32 0.0, %v345
  %v347 = vpop.f32.mrb[0].mxu0
  %348 = vdwg.mxu0
  %v350 = vsel %vm212, %v262, 0
  %v353 = vsel %vm212, %v263, 0
  %v356 = vsel %vm270, %v30, 0
  %358 = vmatprep.subr.mxu0 0.0
  %359 = vmatpush1.msra.mxu0 %v29
  %360 = vmatprep.subr.mxu0 0.0
  %361 = vmatpush1.msra.mxu0 %v356
  %362 = vmatprep.subr.mxu0 0.0
  %363 = vmatpush1.msra.mxu0 0.0
  %364 = vmatprep.subr.mxu0 0.0
  %365 = vmatpush1.msra.mxu0 0.0
  %366 = vmatprep.subr.mxu0 0.0
  %367 = vmatpush1.msra.mxu0 0.0
  %368 = vmatprep.subr.mxu0 0.0
  %369 = vmatpush1.msra.mxu0 0.0
  %370 = vmatprep.subr.mxu0 0.0
  %371 = vmatpush1.msra.mxu0 0.0
  %372 = vmatprep.subr.mxu0 0.0
  %373 = vmatpush1.msra.mxu0 0.0
  %374 = vmatprep.subr.mxu0 0.0
  %375 = vmatpush1.msra.mxu0 0.0
  %376 = vmatprep.subr.mxu0 0.0
  %377 = vmatpush1.msra.mxu0 0.0
  %378 = vmatprep.subr.mxu0 0.0
  %379 = vmatpush1.msra.mxu0 0.0
  %380 = vmatprep.subr.mxu0 0.0
  %381 = vmatpush1.msra.mxu0 0.0
  %382 = vmatprep.subr.mxu0 0.0
  %383 = vmatpush1.msra.mxu0 0.0
  %384 = vmatprep.subr.mxu0 0.0
  %385 = vmatpush1.msra.mxu0 0.0
  %386 = vmatprep.subr.mxu0 0.0
  %387 = vmatpush1.msra.mxu0 0.0
  %388 = vmatprep.subr.mxu0 0.0
  %389 = vmatpush1.msra.mxu0 0.0
  %390 = vmatprep.subr.mxu0 0.0
  %391 = vmatpush1.msra.mxu0 0.0
  %392 = vmatprep.subr.mxu0 0.0
  %393 = vmatpush1.msra.mxu0 0.0
  %394 = vmatprep.subr.mxu0 0.0
  %395 = vmatpush1.msra.mxu0 0.0
  %396 = vmatprep.subr.mxu0 0.0
  %397 = vmatpush1.msra.mxu0 0.0
  %398 = vmatprep.subr.mxu0 0.0
  %399 = vmatpush1.msra.mxu0 0.0
  %400 = vmatprep.subr.mxu0 0.0
  %401 = vmatpush1.msra.mxu0 0.0
  %402 = vmatprep.subr.mxu0 0.0
  %403 = vmatpush1.msra.mxu0 0.0
  %404 = vmatprep.subr.mxu0 0.0
  %405 = vmatpush1.msra.mxu0 0.0
  %406 = vmatprep.subr.mxu0 0.0
  %407 = vmatpush1.msra.mxu0 0.0
  %408 = vmatprep.subr.mxu0 0.0
  %409 = vmatpush1.msra.mxu0 0.0
  %410 = vmatprep.subr.mxu0 0.0
  %411 = vmatpush1.msra.mxu0 0.0
  %412 = vmatprep.subr.mxu0 0.0
  %413 = vmatpush1.msra.mxu0 0.0
  %414 = vmatprep.subr.mxu0 0.0
  %415 = vmatpush1.msra.mxu0 0.0
  %416 = vmatprep.subr.mxu0 0.0
  %417 = vmatpush1.msra.mxu0 0.0
  %418 = vmatprep.subr.mxu0 0.0
  %419 = vmatpush1.msra.mxu0 0.0
  %420 = vmatprep.subr.mxu0 0.0
  %421 = vmatpush1.msra.mxu0 0.0
  %422 = vmatprep.mubr.f32.mxu0 0.0
  %423 = vmatmul.mubr.f32.gmra.mrb[0].mxu0 %v350
  %v424 = vpop.f32.mrb[0].mxu0
  %v425 = vadd.f32 0.0, %v424
  %v426 = vpop.f32.mrb[0].mxu0
  %427 = vmatprep.mubr.f32.mxu0 0.0
  %428 = vmatmul.mubr.f32.gmra.mrb[0].mxu0 %v353
  %v429 = vpop.f32.mrb[0].mxu0
  %v430 = vadd.f32 0.0, %v429
  %v431 = vpop.f32.mrb[0].mxu0
  %432 = vdwg.mxu0
  %433 = vst.msk [vmem:[%s5] sm:$0xff] %vm212, %v260
  %434 = vst.msk [vmem:[%s5 + $0x8] sm:$0x1] %vm216, %v261
  %435 = vst.msk [vmem:[%s5 + $0x10] sm:$0xff] %vm212, %v262
  %436 = vst.msk [vmem:[%s5 + $0x18] sm:$0x1] %vm216, %v263
  %437 = vst.msk [vmem:[%s4] sm:$0xff] %vm33, %v341
  %vm438 = vcmask 253952
  %439 = vst.msk [vmem:[%s4 + $0x8] sm:$0x1] %vm438, %v346
  %440 = vst.msk [vmem:[%s4 + $0x10] sm:$0xff] %vm33, %v425
  %441 = vst.msk [vmem:[%s4 + $0x18] sm:$0x1] %vm438, %v430
  // Predicated region
  $region18: #{tpu_custom_call.1} parent=0 // pred_check
    _
  $region19: #{tpu_custom_call.1} parent=0 // pred_check_branch
    %443 = sbr.rel (0) target = $region21
  $region20: #{tpu_custom_call.1} parent=0 // pred_region
    _
  $region21: #{tpu_custom_call.1} parent=0 // pred_fallthru
    _
  // Predicated region
  $region22: #{tpu_custom_call.1} parent=0 // pred_check
    _
  $region23: #{tpu_custom_call.1} parent=0 // pred_check_branch
    %445 = sbr.rel (0) target = $region25
  $region24: #{tpu_custom_call.1} parent=0 // pred_region
    _
  $region25: #{tpu_custom_call.1} parent=0 // pred_fallthru
    _
  // Predicated region
  $region26: #{tpu_custom_call.1} parent=0 // pred_check
    _
  $region27: #{tpu_custom_call.1} parent=0 // pred_check_branch
    %447 = sbr.rel (0) target = $region29
  $region28: #{tpu_custom_call.1} parent=0 // pred_region
    _
  $region29: #{tpu_custom_call.1} parent=0 // pred_fallthru
    _
  // Predicated region
  $region30: #{tpu_custom_call.1} parent=0 // pred_check
    _
  $region31: #{tpu_custom_call.1} parent=0 // pred_check_branch
    %449 = sbr.rel (0) target = $region33
  $region32: #{tpu_custom_call.1} parent=0 // pred_region
    _
  $region33: #{tpu_custom_call.1} parent=0 // pred_fallthru
    _

</llo_original>
